<compile_context>
chip_gen: v7x
topology: tpu7x:2x2x1
jax: 0.10.0
libtpu: 0.0.40
codegen_flags: <defaults>
</compile_context>

<pallas_src>
import functools

import jax
import jax.numpy as jnp
import numpy as np
from jax.experimental import pallas as pl
from jax.experimental.pallas import tpu as pltpu

_LANE = 128
_MAX_TILE_D = 512
_VMEM_LIMIT = 32 * 1024 * 1024      # safe scoped-VMEM ceiling on v5e/v6e/v7x
_VMEM_BUDGET = 24 * 1024 * 1024     # headroom for double-buffered (t, tile) in+out


def _choose_tile(t, D):
    """Lane-dense padded feature width Dp and feature tile size."""
    Dp = -(-D // _LANE) * _LANE
    # ~16 bytes of VMEM per (row, lane): f32 in + f32 out, double-buffered.
    max_tile = max(_LANE, (_VMEM_BUDGET // (16 * max(t, 1))) // _LANE * _LANE)
    tile = min(_MAX_TILE_D, Dp, max_tile)
    Dp = -(-Dp // tile) * tile
    return Dp, tile


# ----------------------------------------------------------------------------
# Kernels
# ----------------------------------------------------------------------------
def _first_call_kernel(obs_ref, out_ref, mean_ref, std_ref, *, t, eps):
    """First data ever seen (N - t == 0) with t > 1: sample mean / unbiased std."""
    x = obs_ref[...]                                            # (t, tile) f32
    m = jnp.mean(x, axis=0, keepdims=True)                      # (1, tile)
    d = x - m
    var_b = jnp.mean(d * d, axis=0, keepdims=True)              # biased var
    std_u = jnp.sqrt(var_b * (float(t) / float(t - 1)))         # unbiased std
    inv = pl.reciprocal(std_u + eps, approx=False)              # (1, tile)
    mean_ref[...] = m
    std_ref[...] = std_u
    out_ref[...] = d * inv


def _update_kernel(coef_ref, obs_ref, pmean_ref, pstd_ref,
                   out_ref, mean_ref, std_ref, *, eps):
    """Running-statistics merge (N - t > 0); coefficients come from SMEM."""
    c_pm = coef_ref[0]    # (N - t) / N
    c_sm = coef_ref[1]    # t / N
    c_sv = coef_ref[2]    # t / (N - 1)
    c_pv = coef_ref[3]    # (N - t - 1) / (N - 1)   (== 0 when N - t == 1)
    c_df = coef_ref[4]    # t (N - t) / (N (N - 1))

    x = obs_ref[...]                                            # (t, tile) f32
    samp_mean = jnp.mean(x, axis=0, keepdims=True)              # (1, tile)
    d = x - samp_mean
    samp_var = jnp.mean(d * d, axis=0, keepdims=True)           # biased var

    prev_mean = pmean_ref[...]                                  # (1, tile)
    prev_std = pstd_ref[...]                                    # (1, tile)

    new_mean = c_pm * prev_mean + c_sm * samp_mean
    dm = prev_mean - samp_mean
    new_var = (c_sv * samp_var
               + c_pv * (prev_std * prev_std)
               + c_df * (dm * dm))
    new_std = jnp.sqrt(new_var)

    inv = pl.reciprocal(new_std + eps, approx=False)
    mean_ref[...] = new_mean
    std_ref[...] = new_std
    out_ref[...] = (x - new_mean) * inv


# ----------------------------------------------------------------------------
# Cached pallas_call builders (compile once per obs shape)
# ----------------------------------------------------------------------------
def _compiler_params():
    return pltpu.CompilerParams(dimension_semantics=("parallel",),
                                vmem_limit_bytes=_VMEM_LIMIT)


@functools.lru_cache(maxsize=None)
def _build_first_call(t, Dp, tile, eps):
    obs_spec = pl.BlockSpec((t, tile), lambda j: (0, j))
    vec_spec = pl.BlockSpec((1, tile), lambda j: (0, j))
    fn = pl.pallas_call(
        functools.partial(_first_call_kernel, t=t, eps=eps),
        grid=(Dp // tile,),
        out_shape=(jax.ShapeDtypeStruct((t, Dp), jnp.float32),
                   jax.ShapeDtypeStruct((1, Dp), jnp.float32),
                   jax.ShapeDtypeStruct((1, Dp), jnp.float32)),
        in_specs=[obs_spec],
        out_specs=(obs_spec, vec_spec, vec_spec),
        compiler_params=_compiler_params(),
    )
    return jax.jit(fn)


@functools.lru_cache(maxsize=None)
def _build_update_call(t, Dp, tile, eps):
    obs_spec = pl.BlockSpec((t, tile), lambda j: (0, j))
    vec_spec = pl.BlockSpec((1, tile), lambda j: (0, j))
    smem_spec = pl.BlockSpec(memory_space=pltpu.MemorySpace.SMEM)
    fn = pl.pallas_call(
        functools.partial(_update_kernel, eps=eps),
        grid=(Dp // tile,),
        out_shape=(jax.ShapeDtypeStruct((t, Dp), jnp.float32),
                   jax.ShapeDtypeStruct((1, Dp), jnp.float32),
                   jax.ShapeDtypeStruct((1, Dp), jnp.float32)),
        in_specs=[smem_spec, obs_spec, vec_spec, vec_spec],
        out_specs=(obs_spec, vec_spec, vec_spec),
        # prev_mean -> new_mean, prev_std -> new_std written back in place.
        input_output_aliases={2: 1, 3: 2},
        compiler_params=_compiler_params(),
    )
    return jax.jit(fn)


# ----------------------------------------------------------------------------
# Stateful wrapper mirroring the PyTorch module
# ----------------------------------------------------------------------------
def _fit_width(a, Dp):
    cur = a.shape[1]
    if cur == Dp:
        return a
    if cur > Dp:
        return a[:, :Dp]
    return jnp.pad(a, ((0, 0), (0, Dp - cur)))


class InputNormalizer:
    def __init__(self, eps=1e-20):
        self._mean_p = None          # (1, Dp) padded running mean
        self._std_p = None           # (1, Dp) padded running unbiased std
        self._std_defined = False
        self._D = None
        self.count = 0               # Python int, like the PyTorch module
        self.eps = float(eps)

    @property
    def mean(self):
        if self._mean_p is None:
            return None
        return self._mean_p[:, :self._D]

    @property
    def std(self):
        if not self._std_defined:
            return None
        return self._std_p[:, :self._D]

    def __call__(self, obs):
        obs = jnp.asarray(obs, jnp.float32)
        if obs.ndim < 2:
            obs = obs[None, :]
        t, D = obs.shape
        if self._D is None:
            self._D = D
        Dp, tile = _choose_tile(t, D)
        obs_p = obs if Dp == D else jnp.pad(obs, ((0, 0), (0, Dp - D)))

        N = self.count + t
        self.count = N

        if N - t == 0:
            if N > 1:
                out_p, self._mean_p, self._std_p = _build_first_call(
                    t, Dp, tile, self.eps)(obs_p)
                self._std_defined = True
                return out_p[:, :D]
            # Single observation, no history: store mean, return unnormalized.
            # A zero std is stored; its coefficient (N-t-1)/(N-1) is exactly 0
            # on the next (N - t == 1) update, so this is numerically exact.
            self._mean_p = obs_p
            self._std_p = jnp.zeros((1, Dp), jnp.float32)
            self._std_defined = False
            return obs

        # Running update.  Coefficients are runtime SMEM scalars -> the kernel
        # compiles once per obs shape, not once per running count N.
        Nf, tf = float(N), float(t)
        coefs = jnp.array(
            [(Nf - tf) / Nf,                       # prev_mean weight
             tf / Nf,                              # samp_mean weight
             tf / (Nf - 1.0),                      # samp_var weight
             (Nf - tf - 1.0) / (Nf - 1.0),         # prev_var weight (0 if N-t==1)
             tf * (Nf - tf) / (Nf * (Nf - 1.0)),   # mean-difference weight
             0.0, 0.0, 0.0], dtype=jnp.float32)
        prev_mean_p = _fit_width(self._mean_p, Dp)
        prev_std_p = _fit_width(self._std_p, Dp)
        out_p, self._mean_p, self._std_p = _build_update_call(
            t, Dp, tile, self.eps)(coefs, obs_p, prev_mean_p, prev_std_p)
        self._std_defined = True
        return out_p[:, :D]


# ----------------------------------------------------------------------------
# Pure-JAX reference (for correctness check)
# ----------------------------------------------------------------------------
def _reference_two_step(x1, x2, eps):
    t1 = x1.shape[0]
    m1 = x1.mean(axis=0, keepdims=True)
    s1 = jnp.sqrt(((x1 - m1) ** 2).sum(axis=0, keepdims=True) / (t1 - 1))
    y1 = (x1 - m1) / (s1 + eps)

    t2 = x2.shape[0]
    N = t1 + t2
    sm = x2.mean(axis=0, keepdims=True)
    sv = ((x2 - sm) ** 2).mean(axis=0, keepdims=True)
    new_mean = ((N - t2) * m1 + t2 * sm) / N
    new_var = t2 / (N - 1) * sv
    if N - t2 > 1:
        new_var = new_var + (N - t2 - 1) / (N - 1) * s1 * s1
    diff = (m1 - sm) ** 2
    new_std = jnp.sqrt(new_var + t2 * (N - t2) / (N * (N - 1)) * diff)
    y2 = (x2 - new_mean) / (new_std + eps)
    return y1, y2, new_mean, new_std


if __name__ == "__main__":
    key = jax.random.PRNGKey(0)
    k1, k2, k3 = jax.random.split(key, 3)
    t, D = 8, 32
    x1 = jax.random.normal(k1, (t, D), dtype=jnp.float32) * 2.0 + 1.0
    x2 = jax.random.normal(k2, (t, D), dtype=jnp.float32) * 0.5 - 3.0

    norm = InputNormalizer()
    y1 = norm(x1)                   # first-call kernel (N - t == 0, t > 1)
    y2 = norm(x2)                   # running-update kernel (N - t > 1)
    jax.block_until_ready((y1, y2, norm.mean, norm.std))

    r1, r2, rmean, rstd = _reference_two_step(x1, x2, norm.eps)
    np.testing.assert_allclose(np.asarray(y1), np.asarray(r1), rtol=1e-5, atol=1e-5)
    np.testing.assert_allclose(np.asarray(y2), np.asarray(r2), rtol=1e-5, atol=1e-5)
    np.testing.assert_allclose(np.asarray(norm.mean), np.asarray(rmean),
                               rtol=1e-5, atol=1e-5)
    np.testing.assert_allclose(np.asarray(norm.std), np.asarray(rstd),
                               rtol=1e-5, atol=1e-5)

    # Edge case that previously crashed: first batch of size 1 (no std yet),
    # followed by an N - t == 1 update where the prev_std coefficient is 0.
    norm2 = InputNormalizer()
    z1 = jnp.full((1, D), 2.0, dtype=jnp.float32)
    o1 = norm2(z1)                                  # returned unnormalized
    np.testing.assert_allclose(np.asarray(o1), np.asarray(z1))
    z2 = jax.random.normal(k3, (t, D), dtype=jnp.float32)
    o2 = norm2(z2)
    jax.block_until_ready(o2)

    Ne = 1 + t
    sm = z2.mean(axis=0, keepdims=True)
    sv = ((z2 - sm) ** 2).mean(axis=0, keepdims=True)
    nm = (1.0 * z1 + t * sm) / Ne
    nv = t / (Ne - 1) * sv                           # prev_std coefficient == 0
    ns = jnp.sqrt(nv + t * (Ne - t) / (Ne * (Ne - 1)) * (z1 - sm) ** 2)
    ro2 = (z2 - nm) / (ns + norm2.eps)
    np.testing.assert_allclose(np.asarray(o2), np.asarray(ro2), rtol=1e-5, atol=1e-5)
    np.testing.assert_allclose(np.asarray(norm2.mean), np.asarray(nm),
                               rtol=1e-5, atol=1e-5)
    np.testing.assert_allclose(np.asarray(norm2.std), np.asarray(ns),
                               rtol=1e-5, atol=1e-5)

    print("KERNEL_OK")
</pallas_src>

<mosaic_0001>
module attributes {stable_mosaic.version = 11 : i64} {
  func.func @_first_call_kernel(%arg0: i32, %arg1: memref<8x128xf32, #tpu.memory_space<vmem>>, %arg2: memref<8x128xf32, #tpu.memory_space<vmem>>, %arg3: memref<1x128xf32, #tpu.memory_space<vmem>>, %arg4: memref<1x128xf32, #tpu.memory_space<vmem>>) attributes {dimension_semantics = [#tpu.dimension_semantics<parallel>], iteration_bounds = array<i64: 1>, scalar_prefetch = 0 : i64, scratch_operands = 0 : i64, tpu.core_type = #tpu.core_type<tc>, window_params = [{transform_indices = @transform_0, window_bounds = array<i64: 8, 128>}, {transform_indices = @transform_1, window_bounds = array<i64: 8, 128>}, {transform_indices = @transform_2, window_bounds = array<i64: 1, 128>}, {transform_indices = @transform_3, window_bounds = array<i64: 1, 128>}]} {
    %c0 = arith.constant 0 : index
    %c0_0 = arith.constant 0 : index
    %0 = vector.load %arg1[%c0, %c0_0] : memref<8x128xf32, #tpu.memory_space<vmem>>, vector<8x128xf32>
    %cst = arith.constant dense<0.000000e+00> : vector<128xf32>
    %1 = vector.multi_reduction <add>, %0, %cst [0] : vector<8x128xf32> to vector<128xf32>
    %2 = vector.shape_cast %1 : vector<128xf32> to vector<1x128xf32>
    %cst_1 = arith.constant 8.000000e+00 : f32
    %3 = vector.broadcast %cst_1 : f32 to vector<1x128xf32>
    %4 = arith.divf %2, %3 : vector<1x128xf32>
    %5 = vector.broadcast %4 : vector<1x128xf32> to vector<8x128xf32>
    %6 = arith.subf %0, %5 : vector<8x128xf32>
    %7 = arith.mulf %6, %6 : vector<8x128xf32>
    %cst_2 = arith.constant dense<0.000000e+00> : vector<128xf32>
    %8 = vector.multi_reduction <add>, %7, %cst_2 [0] : vector<8x128xf32> to vector<128xf32>
    %9 = vector.shape_cast %8 : vector<128xf32> to vector<1x128xf32>
    %cst_3 = arith.constant 8.000000e+00 : f32
    %10 = vector.broadcast %cst_3 : f32 to vector<1x128xf32>
    %11 = arith.divf %9, %10 : vector<1x128xf32>
    %cst_4 = arith.constant 1.14285719 : f32
    %12 = vector.broadcast %cst_4 : f32 to vector<1x128xf32>
    %13 = arith.mulf %11, %12 : vector<1x128xf32>
    %14 = math.sqrt %13 : vector<1x128xf32>
    %cst_5 = arith.constant 9.99999968E-21 : f32
    %15 = vector.broadcast %cst_5 : f32 to vector<1x128xf32>
    %16 = arith.addf %14, %15 : vector<1x128xf32>
    %17 = tpu.reciprocal %16 : vector<1x128xf32> -> vector<1x128xf32>
    %c0_6 = arith.constant 0 : index
    %c0_7 = arith.constant 0 : index
    %18 = vector.load %arg3[%c0_6, %c0_7] : memref<1x128xf32, #tpu.memory_space<vmem>>, vector<1x128xf32>
    tpu.vector_store %arg3[%c0_6, %c0_7], %4 {strides = array<i32>} : memref<1x128xf32, #tpu.memory_space<vmem>>, vector<1x128xf32>,
    %c0_8 = arith.constant 0 : index
    %c0_9 = arith.constant 0 : index
    %19 = vector.load %arg4[%c0_8, %c0_9] : memref<1x128xf32, #tpu.memory_space<vmem>>, vector<1x128xf32>
    tpu.vector_store %arg4[%c0_8, %c0_9], %14 {strides = array<i32>} : memref<1x128xf32, #tpu.memory_space<vmem>>, vector<1x128xf32>,
    %20 = vector.broadcast %17 : vector<1x128xf32> to vector<8x128xf32>
    %21 = arith.mulf %6, %20 : vector<8x128xf32>
    %c0_10 = arith.constant 0 : index
    %c0_11 = arith.constant 0 : index
    %22 = vector.load %arg2[%c0_10, %c0_11] : memref<8x128xf32, #tpu.memory_space<vmem>>, vector<8x128xf32>
    tpu.vector_store %arg2[%c0_10, %c0_11], %21 {strides = array<i32>} : memref<8x128xf32, #tpu.memory_space<vmem>>, vector<8x128xf32>,
    return
  }
  func.func @transform_0(%arg0: i32) -> (i32, i32) {
    %c0_i32 = arith.constant 0 : i32
    %c0_i32_0 = arith.constant 0 : i32
    return %c0_i32, %arg0 : i32, i32
  }
  func.func @transform_1(%arg0: i32) -> (i32, i32) {
    %c0_i32 = arith.constant 0 : i32
    %c0_i32_0 = arith.constant 0 : i32
    return %c0_i32, %arg0 : i32, i32
  }
  func.func @transform_2(%arg0: i32) -> (i32, i32) {
    %c0_i32 = arith.constant 0 : i32
    %c0_i32_0 = arith.constant 0 : i32
    return %c0_i32, %arg0 : i32, i32
  }
  func.func @transform_3(%arg0: i32) -> (i32, i32) {
    %c0_i32 = arith.constant 0 : i32
    %c0_i32_0 = arith.constant 0 : i32
    return %c0_i32, %arg0 : i32, i32
  }
}

</mosaic_0001>

<llo_original>
// kernel: tpu_custom_call.1
$region0: #{tpu_custom_call.1}
  #allocation0 [shape = 'u32[]', space=smem, size = 0x4, offset = 0x4, fixed_abs, tag = 'smem constant byte address 0x4 - core index']
  #allocation1 [shape = 'u32[144,128]{1,0:T(1,128)}', space=vmem, size = 0x12000, scoped, tag = 'internal scratch']
  %s0 = inlined_call_operand.hbm [shape: f32[8,128], index: 0, kind: input, shape index: {}]
  %s1 = inlined_call_operand.hbm [shape: f32[8,128], index: 1, kind: output, shape index: {0}]
  %s2 = inlined_call_operand.hbm [shape: f32[1,128], index: 2, kind: output, shape index: {1}]
  %s3 = inlined_call_operand.hbm [shape: f32[1,128], index: 3, kind: output, shape index: {2}]
  %4 = xla_tuple %s1, %s2, %s3
  %s5 = sld [smem:[#allocation0]]
  $region34: #{tpu_custom_call.1} parent=0
    _
  %s7 = ssub.s32 1, %s5
  %s8 = scalar_select 0, %s7, %s5
  $region1: #{tpu_custom_call.1} parent=0
    #allocation2 [shape = 'u8[4096]{0}', space=vmem, size = 0x1000, scoped, tag = 'input window, operand 0, single buffered']
    #allocation3 [shape = 's32[1]{0}', space=sflag, size = 0x4, scoped, tag = 'scoped memory for tpu_custom_call.1']
    #allocation4 [shape = 's32[1]{0}', space=sflag, size = 0x4, scoped, tag = 'scoped memory for tpu_custom_call.1']
    #allocation5 [shape = 'u8[4096]{0}', space=vmem, size = 0x1000, scoped, tag = 'output window, operand 0, single buffered']
    #allocation6 [shape = 'u8[512]{0}', space=vmem, size = 0x400, scoped, tag = 'output window, operand 1, single buffered']
    #allocation7 [shape = 's32[1]{0}', space=sflag, size = 0x4, scoped, tag = 'scoped memory for tpu_custom_call.1']
    #allocation8 [shape = 'u8[512]{0}', space=vmem, size = 0x400, scoped, tag = 'output window, operand 2, single buffered']
    %9 = vsyncpa [#allocation3], 0
    %10 = vsyncpa [#allocation4], 0
    %11 = vsyncpa [#allocation7], 0
    // Predicated region
    $region2: #{tpu_custom_call.1} parent=1 // pred_check
      _
    $region3: #{tpu_custom_call.1} parent=1 // pred_check_branch
      %13 = sbr.rel (0) target = $region5
    $region4: #{tpu_custom_call.1} parent=1 // pred_region
      %s15 = ssub.s32 128, 128
      %16 = vsyncadd [#allocation3], %s15
      %s18 = sshll.u32 [#allocation2], 4
      %s19 = int_to_ptr.vmem [resolvable:$true] %s18
      %21 = dma.hbm_to_vmem [thread:$0]  %s0, 128, %s19, [#allocation3]
    $region5: #{tpu_custom_call.1} parent=1 // pred_fallthru
      _
    // Predicated region
    $region6: #{tpu_custom_call.1} parent=1 // pred_check
      _
    $region7: #{tpu_custom_call.1} parent=1 // pred_check_branch
      %23 = sbr.rel (0) target = $region9
    $region8: #{tpu_custom_call.1} parent=1 // pred_region
      %24 = dma.done [#allocation3], 128
    $region9: #{tpu_custom_call.1} parent=1 // pred_fallthru
      _
    %v25 = vld [vmem:[#allocation2] sm:$0xff]
    %v26 = vrot.slane %v25, 4
    %v27 = vadd.f32 %v25, %v26
    %v28 = vrot.slane %v27, 2
    %v29 = vadd.f32 %v27, %v28
    %v30 = vrot.slane %v29, 1
    %v31 = vadd.f32 %v29, %v30
    %v32 = vrcp.pop 8.0
    %v33 = vmul.f32 %v31, %v32
    %v34 = vsub.f32 %v25, %v33
    %v35 = vmul.f32 %v34, %v34
    %v36 = vrot.slane %v35, 4
    %v37 = vadd.f32 %v35, %v36
    %v38 = vrot.slane %v37, 2
    %v39 = vadd.f32 %v37, %v38
    %v40 = vrot.slane %v39, 1
    %v41 = vadd.f32 %v39, %v40
    %v42 = vmul.f32 %v41, %v32
    %v43 = vmul.f32 %v42, 1.1428572
    %v44 = vrsqrt.pop %v43
    %v45 = vmul.f32 %v43, %v44
    %vm46 = vcmp.eq.f32.partialorder %v43, inf
    %v47 = vsel %vm46, %v43, %v45
    %vm48 = vcmp.eq.f32.partialorder %v43, 0.0
    %v49 = vand.u32 %v43, 2147483648
    %v50 = vsel %vm48, %v49, %v47
    %v51 = vadd.f32 %v50, 1e-20
    %v52 = vrcp.pop %v51
    %53 = vst [vmem:[#allocation6] sm:$0x1] %v33
    %54 = vst [vmem:[#allocation8] sm:$0x1] %v50
    %v55 = vmul.f32 %v34, %v52
    %56 = vst [vmem:[#allocation5] sm:$0xff] %v55
    // Predicated region
    $region10: #{tpu_custom_call.1} parent=1 // pred_check
      _
    $region11: #{tpu_custom_call.1} parent=1 // pred_check_branch
      %58 = sbr.rel (0) target = $region13
    $region12: #{tpu_custom_call.1} parent=1 // pred_region
      %s60 = ssub.s32 128, 128
      %61 = vsyncadd [#allocation4], %s60
      %s63 = sshll.u32 [#allocation5], 4
      %s64 = int_to_ptr.vmem [resolvable:$true] %s63
      %66 = dma.vmem_to_hbm [thread:$0]  %s64, 128, %s1, [#allocation4]
    $region13: #{tpu_custom_call.1} parent=1 // pred_fallthru
      _
    // Predicated region
    $region14: #{tpu_custom_call.1} parent=1 // pred_check
      _
    $region15: #{tpu_custom_call.1} parent=1 // pred_check_branch
      %68 = sbr.rel (0) target = $region17
    $region16: #{tpu_custom_call.1} parent=1 // pred_region
      %s70 = ssub.s32 16, 16
      %71 = vsyncadd [#allocation7], %s70
      %s73 = sshll.u32 [#allocation6], 4
      %s74 = int_to_ptr.vmem [resolvable:$true] %s73
      %76 = dma.vmem_to_hbm [thread:$0]  %s74, 16, %s2, [#allocation7]
    $region17: #{tpu_custom_call.1} parent=1 // pred_fallthru
      _
    // Predicated region
    $region18: #{tpu_custom_call.1} parent=1 // pred_check
      _
    $region19: #{tpu_custom_call.1} parent=1 // pred_check_branch
      %78 = sbr.rel (0) target = $region21
    $region20: #{tpu_custom_call.1} parent=1 // pred_region
      %s80 = ssub.s32 16, 16
      %81 = vsyncadd [#allocation7], %s80
      %s83 = sshll.u32 [#allocation8], 4
      %s84 = int_to_ptr.vmem [resolvable:$true] %s83
      %86 = dma.vmem_to_hbm [thread:$0]  %s84, 16, %s3, [#allocation7]
    $region21: #{tpu_custom_call.1} parent=1 // pred_fallthru
      _
    // Predicated region
    $region22: #{tpu_custom_call.1} parent=1 // pred_check
      _
    $region23: #{tpu_custom_call.1} parent=1 // pred_check_branch
      %88 = sbr.rel (0) target = $region25
    $region24: #{tpu_custom_call.1} parent=1 // pred_region
      %89 = dma.done [#allocation4], 128
    $region25: #{tpu_custom_call.1} parent=1 // pred_fallthru
      _
    // Predicated region
    $region26: #{tpu_custom_call.1} parent=1 // pred_check
      _
    $region27: #{tpu_custom_call.1} parent=1 // pred_check_branch
      %91 = sbr.rel (0) target = $region29
    $region28: #{tpu_custom_call.1} parent=1 // pred_region
      %92 = dma.done [#allocation7], 16
    $region29: #{tpu_custom_call.1} parent=1 // pred_fallthru
      _
    // Predicated region
    $region30: #{tpu_custom_call.1} parent=1 // pred_check
      _
    $region31: #{tpu_custom_call.1} parent=1 // pred_check_branch
      %94 = sbr.rel (0) target = $region33
    $region32: #{tpu_custom_call.1} parent=1 // pred_region
      %95 = dma.done [#allocation7], 16
    $region33: #{tpu_custom_call.1} parent=1 // pred_fallthru
      _
    %96 = vsyncpa [#allocation3], 1
    %97 = vsyncpa [#allocation4], 1
    %98 = vsyncpa [#allocation7], 1

</llo_original>
